<compile_context>
chip_gen: v7x
topology: tpu7x:2x2x1
jax: 0.10.0
libtpu: 0.0.40
codegen_flags: <defaults>
</compile_context>

<pallas_src>
import jax
import jax.numpy as jnp
from jax.experimental import pallas as pl
from jax.experimental.pallas import tpu as pltpu


def _round_up(a, b):
    return (a + b - 1) // b * b


def _pick_rows_per_block(H, W, N, Cin, itemsize, cap_bytes=4 << 20):
    """Rows of the input image processed per grid step.

    A block must either span the full image (hb == H) or keep the flattened
    lane extent of both the input block (hb*W) and the output block (hb*W/4)
    a multiple of 128, i.e. hb*W % 512 == 0, so every BlockSpec stays
    (8,128)-conformant.
    """
    valid = [hb for hb in range(2, H + 1, 2)
             if H % hb == 0 and (hb == H or (hb * W) % 512 == 0)]
    fitting = [hb for hb in valid if Cin * hb * W * itemsize <= cap_bytes]
    hb = max(fitting) if fitting else min(valid)
    # Give the megacore >= 4 grid steps when the problem allows it.
    if N * (H // hb) < 4:
        smaller = [h for h in valid if N * (H // h) >= 4]
        if smaller:
            hb = max(smaller)
    return hb


def _make_transition_kernel(npairs, W, Wo, ew_dtype, mat_dtype):
    """Builds the fused kernel for a block of `npairs` output rows.

    Refs (per grid step):
      x_ref:     (Cin, 2*npairs*W)   raw NCHW rows (input dtype)
      scale_ref: (Cin, 1) f32        folded BN scale
      shift_ref: (Cin, 1) f32        folded BN shift
      w_ref:     (Coutp, Cin)        1x1 conv weight (mat_dtype)
      pool_ref:  (W, Wo)             horizontal 2x avg-pool matrix, 0.25 folded
      o_ref:     (Coutp, npairs*Wo)  output block (mat_dtype)
      rp_ref:    (Cin, npairs*Wo)    VMEM scratch: pooled BN+ReLU activations
    """

    def kernel(x_ref, scale_ref, shift_ref, w_ref, pool_ref, o_ref, rp_ref):
        scale = scale_ref[...].astype(ew_dtype)            # (Cin, 1)
        shift = shift_ref[...].astype(ew_dtype)            # (Cin, 1)
        pool = pool_ref[...]                                # (W, Wo)

        # Per output row (= one 2-row window): BN + ReLU, vertical pool (add of
        # the two rows), horizontal pool via the tiny selection matmul.
        for k in range(npairs):
            even = x_ref[:, pl.ds((2 * k) * W, W)].astype(ew_dtype)      # (Cin, W)
            odd = x_ref[:, pl.ds((2 * k + 1) * W, W)].astype(ew_dtype)   # (Cin, W)
            r = (jnp.maximum(even * scale + shift, 0.0)
                 + jnp.maximum(odd * scale + shift, 0.0))                # (Cin, W)
            rp = jnp.dot(r.astype(mat_dtype), pool,
                         preferred_element_type=jnp.float32)             # (Cin, Wo)
            rp_ref[:, pl.ds(k * Wo, Wo)] = rp.astype(mat_dtype)

        # Single channel-contraction matmul for the whole block (MXU, f32 acc).
        out = jnp.dot(w_ref[...], rp_ref[...],
                      preferred_element_type=jnp.float32)   # (Coutp, npairs*Wo)
        o_ref[...] = out.astype(o_ref.dtype)

    return kernel


def transition_forward(x, gamma, beta, run_mean, run_var, conv_w,
                       eps=1e-5, mat_dtype=jnp.bfloat16):
    """Pallas-backed forward of _Transition. x: (N, Cin, H, W) NCHW."""
    N, Cin, H, W = x.shape
    Cout = conv_w.shape[0]
    assert H % 2 == 0 and W % 2 == 0, "H and W must be even"
    Ho, Wo = H // 2, W // 2

    mat_dtype = jnp.dtype(mat_dtype)
    x_item = jnp.dtype(x.dtype).itemsize
    mat_item = mat_dtype.itemsize

    # ---- fold inference-mode BN into per-channel scale/shift (f32) ----
    scale1 = (gamma / jnp.sqrt(run_var + eps)).astype(jnp.float32)       # (Cin,)
    shift1 = (beta - run_mean * scale1).astype(jnp.float32)              # (Cin,)
    scale = scale1.reshape(Cin, 1)
    shift = shift1.reshape(Cin, 1)

    # ---- 1x1 conv weight: (Cout, Cin, 1, 1) -> (Coutp, Cin), Cout padded to 8 ----
    Coutp = max(8, _round_up(Cout, 8))
    w2 = conv_w[:, :, 0, 0].astype(jnp.float32)                          # (Cout, Cin)
    if Coutp != Cout:
        w2 = jnp.pad(w2, ((0, Coutp - Cout), (0, 0)))
    w2 = w2.astype(mat_dtype)

    # ---- horizontal 2x average-pool selection matrix, 0.25 (full 2x2 avg) folded ----
    pool = jnp.zeros((W, Wo), jnp.float32)
    pool = pool.at[jnp.arange(W), jnp.arange(W) // 2].set(0.25).astype(mat_dtype)

    # ---- elementwise dtype: bf16 on chips with a bf16 VPU, f32 otherwise (v5e) ----
    dk = jax.devices()[0].device_kind.lower()
    bf16_valu = ("v6" in dk) or ("v7" in dk)
    ew_dtype = jnp.bfloat16 if (bf16_valu and mat_dtype == jnp.dtype(jnp.bfloat16)) \
        else jnp.float32

    # ---- tiling: whole rows per block, adaptive row count ----
    hb = _pick_rows_per_block(H, W, N, Cin, x_item)
    npairs = hb // 2
    nrb = H // hb
    npb = npairs * Wo                       # output lanes per block

    x3 = x.reshape(N, Cin, H * W)           # free view, no data movement

    # ---- VMEM budget (double-buffered blocks + scratch) with headroom ----
    xblk = Cin * hb * W * x_item
    wbytes = Coutp * Cin * mat_item
    outblk = Coutp * npb * mat_item
    rpbytes = Cin * npb * mat_item
    smalls = 2 * (2 * Cin * 4) + 2 * W * Wo * mat_item
    est = 2 * xblk + 2 * wbytes + 2 * outblk + rpbytes + smalls
    vmem_limit = int(min(56 << 20, max(24 << 20, 2 * est + (8 << 20))))

    cost = pl.CostEstimate(
        flops=2 * N * Ho * Wo * Cin * Coutp + 2 * N * Ho * Cin * W * Wo,
        transcendentals=0,
        bytes_accessed=(N * Cin * H * W * x_item          # x read (once, no reshuffle)
                        + Coutp * Cin * mat_item           # weight
                        + N * Coutp * Ho * Wo * mat_item   # output (bf16)
                        + 2 * Cin * 4 + W * Wo * mat_item),
    )

    kernel = _make_transition_kernel(npairs, W, Wo, ew_dtype, mat_dtype)

    out3 = pl.pallas_call(
        kernel,
        out_shape=jax.ShapeDtypeStruct((N, Coutp, Ho * Wo), mat_dtype),
        grid=(N, nrb),
        in_specs=[
            pl.BlockSpec((None, Cin, hb * W), lambda n, j: (n, 0, j)),
            pl.BlockSpec((Cin, 1), lambda n, j: (0, 0)),
            pl.BlockSpec((Cin, 1), lambda n, j: (0, 0)),
            pl.BlockSpec((Coutp, Cin), lambda n, j: (0, 0)),
            pl.BlockSpec((W, Wo), lambda n, j: (0, 0)),
        ],
        out_specs=pl.BlockSpec((None, Coutp, npb), lambda n, j: (n, 0, j)),
        scratch_shapes=[pltpu.VMEM((Cin, npb), mat_dtype)],
        compiler_params=pltpu.CompilerParams(
            dimension_semantics=("parallel", "parallel"),
            vmem_limit_bytes=vmem_limit,
        ),
        cost_estimate=cost,
    )(x3, scale, shift, w2, pool)

    # (N, Coutp, Ho*Wo) -> (N, Cout, Ho, Wo); slice is a no-op when Coutp == Cout.
    out = out3[:, :Cout, :].reshape(N, Cout, Ho, Wo)
    return out


def transition_reference(x, gamma, beta, run_mean, run_var, conv_w, eps=1e-5):
    """Pure-JAX reference (inference-mode BN), NCHW in / NCHW out."""
    xn = (x - run_mean[None, :, None, None]) / jnp.sqrt(
        run_var[None, :, None, None] + eps)
    xn = xn * gamma[None, :, None, None] + beta[None, :, None, None]
    xr = jnp.maximum(xn, 0.0)
    z = jnp.einsum('nchw,oc->nohw', xr, conv_w[:, :, 0, 0])
    N, Co, H, W = z.shape
    return z.reshape(N, Co, H // 2, 2, W // 2, 2).mean(axis=(3, 5))


if __name__ == "__main__":
    # Small shapes consistent with the module (compression 0.5: Cin=4 -> Cout=2)
    N, Cin, H, W = 2, 4, 16, 16
    Cout = 2

    key = jax.random.PRNGKey(0)
    kx, kg, kb, km, kv, kw = jax.random.split(key, 6)

    x = jax.random.normal(kx, (N, Cin, H, W), dtype=jnp.float32)

    # Deterministic synthetic parameters (BatchNorm2d + Conv2d(1x1, bias=False))
    gamma = 1.0 + 0.1 * jax.random.normal(kg, (Cin,), dtype=jnp.float32)
    beta = 0.1 * jax.random.normal(kb, (Cin,), dtype=jnp.float32)
    run_mean = 0.05 * jax.random.normal(km, (Cin,), dtype=jnp.float32)
    run_var = 1.0 + 0.1 * jax.nn.softplus(
        jax.random.normal(kv, (Cin,), dtype=jnp.float32))
    conv_w = jax.random.normal(kw, (Cout, Cin, 1, 1), dtype=jnp.float32) * (1.0 / Cin) ** 0.5

    ref = transition_reference(x, gamma, beta, run_mean, run_var, conv_w)

    # f32 matmul path: tight tolerance
    out_f32 = transition_forward(x, gamma, beta, run_mean, run_var, conv_w,
                                 mat_dtype=jnp.float32)
    out_f32 = jax.block_until_ready(out_f32)
    assert out_f32.shape == (N, Cout, H // 2, W // 2), out_f32.shape
    assert jnp.allclose(out_f32, ref, atol=1e-4, rtol=1e-4), \
        float(jnp.max(jnp.abs(out_f32 - ref)))

    # bf16 path (default: bf16 matmul operands + bf16 output): looser tolerance
    out_bf16 = transition_forward(x, gamma, beta, run_mean, run_var, conv_w,
                                  mat_dtype=jnp.bfloat16)
    out_bf16 = jax.block_until_ready(out_bf16)
    assert out_bf16.shape == (N, Cout, H // 2, W // 2), out_bf16.shape
    assert jnp.allclose(out_bf16.astype(jnp.float32), ref, atol=5e-2, rtol=5e-2), \
        float(jnp.max(jnp.abs(out_bf16.astype(jnp.float32) - ref)))

    print("KERNEL_OK")
</pallas_src>

<mosaic_0001>
module attributes {stable_mosaic.version = 11 : i64} {
  func.func @kernel(%arg0: i32, %arg1: i32, %arg2: memref<1x4x256xf32, #tpu.memory_space<vmem>>, %arg3: memref<4x1xf32, #tpu.memory_space<vmem>>, %arg4: memref<4x1xf32, #tpu.memory_space<vmem>>, %arg5: memref<8x4xf32, #tpu.memory_space<vmem>>, %arg6: memref<16x8xf32, #tpu.memory_space<vmem>>, %arg7: memref<1x8x64xf32, #tpu.memory_space<vmem>>, %arg8: memref<4x64xf32, #tpu.memory_space<vmem>>) attributes {dimension_semantics = [#tpu.dimension_semantics<parallel>, #tpu.dimension_semantics<parallel>], iteration_bounds = array<i64: 2, 1>, scalar_prefetch = 0 : i64, scratch_operands = 1 : i64, tpu.core_type = #tpu.core_type<tc>, window_params = [{transform_indices = @transform_0, window_bounds = array<i64: 1, 4, 256>}, {pipeline_mode = #tpu.pipeline_mode<synchronous>, transform_indices = @transform_1, window_bounds = array<i64: 4, 1>}, {pipeline_mode = #tpu.pipeline_mode<synchronous>, transform_indices = @transform_2, window_bounds = array<i64: 4, 1>}, {pipeline_mode = #tpu.pipeline_mode<synchronous>, transform_indices = @transform_3, window_bounds = array<i64: 8, 4>}, {pipeline_mode = #tpu.pipeline_mode<synchronous>, transform_indices = @transform_4, window_bounds = array<i64: 16, 8>}, {transform_indices = @transform_5, window_bounds = array<i64: 1, 8, 64>}]} {
    %c0 = arith.constant 0 : index
    %c0_0 = arith.constant 0 : index
    %0 = vector.load %arg3[%c0, %c0_0] : memref<4x1xf32, #tpu.memory_space<vmem>>, vector<4x1xf32>
    %c0_1 = arith.constant 0 : index
    %c0_2 = arith.constant 0 : index
    %1 = vector.load %arg4[%c0_1, %c0_2] : memref<4x1xf32, #tpu.memory_space<vmem>>, vector<4x1xf32>
    %c0_3 = arith.constant 0 : index
    %c0_4 = arith.constant 0 : index
    %2 = vector.load %arg6[%c0_3, %c0_4] : memref<16x8xf32, #tpu.memory_space<vmem>>, vector<16x8xf32>
    %c0_5 = arith.constant 0 : index
    %c0_6 = arith.constant 0 : index
    %c0_7 = arith.constant 0 : index
    %3 = vector.load %arg2[%c0_5, %c0_6, %c0_7] : memref<1x4x256xf32, #tpu.memory_space<vmem>>, vector<1x4x16xf32>
    %4 = vector.shape_cast %3 : vector<1x4x16xf32> to vector<4x16xf32>
    %c0_8 = arith.constant 0 : index
    %c0_9 = arith.constant 0 : index
    %c16 = arith.constant 16 : index
    %5 = vector.load %arg2[%c0_8, %c0_9, %c16] : memref<1x4x256xf32, #tpu.memory_space<vmem>>, vector<1x4x16xf32>
    %6 = vector.shape_cast %5 : vector<1x4x16xf32> to vector<4x16xf32>
    %7 = vector.broadcast %0 : vector<4x1xf32> to vector<4x16xf32>
    %8 = arith.mulf %4, %7 : vector<4x16xf32>
    %9 = vector.broadcast %1 : vector<4x1xf32> to vector<4x16xf32>
    %10 = arith.addf %8, %9 : vector<4x16xf32>
    %cst = arith.constant 0.000000e+00 : f32
    %11 = vector.broadcast %cst : f32 to vector<4x16xf32>
    %12 = arith.maximumf %10, %11 : vector<4x16xf32>
    %13 = vector.broadcast %0 : vector<4x1xf32> to vector<4x16xf32>
    %14 = arith.mulf %6, %13 : vector<4x16xf32>
    %15 = vector.broadcast %1 : vector<4x1xf32> to vector<4x16xf32>
    %16 = arith.addf %14, %15 : vector<4x16xf32>
    %cst_10 = arith.constant 0.000000e+00 : f32
    %17 = vector.broadcast %cst_10 : f32 to vector<4x16xf32>
    %18 = arith.maximumf %16, %17 : vector<4x16xf32>
    %19 = arith.addf %12, %18 : vector<4x16xf32>
    %cst_11 = arith.constant dense<0.000000e+00> : vector<4x8xf32>
    %20 = tpu.matmul %19, %2, %cst_11 {dimension_numbers = #tpu.dot_dimension_numbers<[1], [0], [0], [1], [0, 0, 1, 1], [], []>} : vector<4x16xf32>, vector<16x8xf32>, vector<4x8xf32> -> vector<4x8xf32>
    %c0_12 = arith.constant 0 : index
    %c0_13 = arith.constant 0 : index
    %21 = vector.load %arg8[%c0_12, %c0_13] : memref<4x64xf32, #tpu.memory_space<vmem>>, vector<4x8xf32>
    tpu.vector_store %arg8[%c0_12, %c0_13], %20 {strides = array<i32>} : memref<4x64xf32, #tpu.memory_space<vmem>>, vector<4x8xf32>,
    %c0_14 = arith.constant 0 : index
    %c0_15 = arith.constant 0 : index
    %c32 = arith.constant 32 : index
    %22 = vector.load %arg2[%c0_14, %c0_15, %c32] : memref<1x4x256xf32, #tpu.memory_space<vmem>>, vector<1x4x16xf32>
    %23 = vector.shape_cast %22 : vector<1x4x16xf32> to vector<4x16xf32>
    %c0_16 = arith.constant 0 : index
    %c0_17 = arith.constant 0 : index
    %c48 = arith.constant 48 : index
    %24 = vector.load %arg2[%c0_16, %c0_17, %c48] : memref<1x4x256xf32, #tpu.memory_space<vmem>>, vector<1x4x16xf32>
    %25 = vector.shape_cast %24 : vector<1x4x16xf32> to vector<4x16xf32>
    %26 = vector.broadcast %0 : vector<4x1xf32> to vector<4x16xf32>
    %27 = arith.mulf %23, %26 : vector<4x16xf32>
    %28 = vector.broadcast %1 : vector<4x1xf32> to vector<4x16xf32>
    %29 = arith.addf %27, %28 : vector<4x16xf32>
    %cst_18 = arith.constant 0.000000e+00 : f32
    %30 = vector.broadcast %cst_18 : f32 to vector<4x16xf32>
    %31 = arith.maximumf %29, %30 : vector<4x16xf32>
    %32 = vector.broadcast %0 : vector<4x1xf32> to vector<4x16xf32>
    %33 = arith.mulf %25, %32 : vector<4x16xf32>
    %34 = vector.broadcast %1 : vector<4x1xf32> to vector<4x16xf32>
    %35 = arith.addf %33, %34 : vector<4x16xf32>
    %cst_19 = arith.constant 0.000000e+00 : f32
    %36 = vector.broadcast %cst_19 : f32 to vector<4x16xf32>
    %37 = arith.maximumf %35, %36 : vector<4x16xf32>
    %38 = arith.addf %31, %37 : vector<4x16xf32>
    %cst_20 = arith.constant dense<0.000000e+00> : vector<4x8xf32>
    %39 = tpu.matmul %38, %2, %cst_20 {dimension_numbers = #tpu.dot_dimension_numbers<[1], [0], [0], [1], [0, 0, 1, 1], [], []>} : vector<4x16xf32>, vector<16x8xf32>, vector<4x8xf32> -> vector<4x8xf32>
    %c0_21 = arith.constant 0 : index
    %c8 = arith.constant 8 : index
    %40 = vector.load %arg8[%c0_21, %c8] : memref<4x64xf32, #tpu.memory_space<vmem>>, vector<4x8xf32>
    tpu.vector_store %arg8[%c0_21, %c8], %39 {strides = array<i32>} : memref<4x64xf32, #tpu.memory_space<vmem>>, vector<4x8xf32>,
    %c0_22 = arith.constant 0 : index
    %c0_23 = arith.constant 0 : index
    %c64 = arith.constant 64 : index
    %41 = vector.load %arg2[%c0_22, %c0_23, %c64] : memref<1x4x256xf32, #tpu.memory_space<vmem>>, vector<1x4x16xf32>
    %42 = vector.shape_cast %41 : vector<1x4x16xf32> to vector<4x16xf32>
    %c0_24 = arith.constant 0 : index
    %c0_25 = arith.constant 0 : index
    %c80 = arith.constant 80 : index
    %43 = vector.load %arg2[%c0_24, %c0_25, %c80] : memref<1x4x256xf32, #tpu.memory_space<vmem>>, vector<1x4x16xf32>
    %44 = vector.shape_cast %43 : vector<1x4x16xf32> to vector<4x16xf32>
    %45 = vector.broadcast %0 : vector<4x1xf32> to vector<4x16xf32>
    %46 = arith.mulf %42, %45 : vector<4x16xf32>
    %47 = vector.broadcast %1 : vector<4x1xf32> to vector<4x16xf32>
    %48 = arith.addf %46, %47 : vector<4x16xf32>
    %cst_26 = arith.constant 0.000000e+00 : f32
    %49 = vector.broadcast %cst_26 : f32 to vector<4x16xf32>
    %50 = arith.maximumf %48, %49 : vector<4x16xf32>
    %51 = vector.broadcast %0 : vector<4x1xf32> to vector<4x16xf32>
    %52 = arith.mulf %44, %51 : vector<4x16xf32>
    %53 = vector.broadcast %1 : vector<4x1xf32> to vector<4x16xf32>
    %54 = arith.addf %52, %53 : vector<4x16xf32>
    %cst_27 = arith.constant 0.000000e+00 : f32
    %55 = vector.broadcast %cst_27 : f32 to vector<4x16xf32>
    %56 = arith.maximumf %54, %55 : vector<4x16xf32>
    %57 = arith.addf %50, %56 : vector<4x16xf32>
    %cst_28 = arith.constant dense<0.000000e+00> : vector<4x8xf32>
    %58 = tpu.matmul %57, %2, %cst_28 {dimension_numbers = #tpu.dot_dimension_numbers<[1], [0], [0], [1], [0, 0, 1, 1], [], []>} : vector<4x16xf32>, vector<16x8xf32>, vector<4x8xf32> -> vector<4x8xf32>
    %c0_29 = arith.constant 0 : index
    %c16_30 = arith.constant 16 : index
    %59 = vector.load %arg8[%c0_29, %c16_30] : memref<4x64xf32, #tpu.memory_space<vmem>>, vector<4x8xf32>
    tpu.vector_store %arg8[%c0_29, %c16_30], %58 {strides = array<i32>} : memref<4x64xf32, #tpu.memory_space<vmem>>, vector<4x8xf32>,
    %c0_31 = arith.constant 0 : index
    %c0_32 = arith.constant 0 : index
    %c96 = arith.constant 96 : index
    %60 = vector.load %arg2[%c0_31, %c0_32, %c96] : memref<1x4x256xf32, #tpu.memory_space<vmem>>, vector<1x4x16xf32>
    %61 = vector.shape_cast %60 : vector<1x4x16xf32> to vector<4x16xf32>
    %c0_33 = arith.constant 0 : index
    %c0_34 = arith.constant 0 : index
    %c112 = arith.constant 112 : index
    %62 = vector.load %arg2[%c0_33, %c0_34, %c112] : memref<1x4x256xf32, #tpu.memory_space<vmem>>, vector<1x4x16xf32>
    %63 = vector.shape_cast %62 : vector<1x4x16xf32> to vector<4x16xf32>
    %64 = vector.broadcast %0 : vector<4x1xf32> to vector<4x16xf32>
    %65 = arith.mulf %61, %64 : vector<4x16xf32>
    %66 = vector.broadcast %1 : vector<4x1xf32> to vector<4x16xf32>
    %67 = arith.addf %65, %66 : vector<4x16xf32>
    %cst_35 = arith.constant 0.000000e+00 : f32
    %68 = vector.broadcast %cst_35 : f32 to vector<4x16xf32>
    %69 = arith.maximumf %67, %68 : vector<4x16xf32>
    %70 = vector.broadcast %0 : vector<4x1xf32> to vector<4x16xf32>
    %71 = arith.mulf %63, %70 : vector<4x16xf32>
    %72 = vector.broadcast %1 : vector<4x1xf32> to vector<4x16xf32>
    %73 = arith.addf %71, %72 : vector<4x16xf32>
    %cst_36 = arith.constant 0.000000e+00 : f32
    %74 = vector.broadcast %cst_36 : f32 to vector<4x16xf32>
    %75 = arith.maximumf %73, %74 : vector<4x16xf32>
    %76 = arith.addf %69, %75 : vector<4x16xf32>
    %cst_37 = arith.constant dense<0.000000e+00> : vector<4x8xf32>
    %77 = tpu.matmul %76, %2, %cst_37 {dimension_numbers = #tpu.dot_dimension_numbers<[1], [0], [0], [1], [0, 0, 1, 1], [], []>} : vector<4x16xf32>, vector<16x8xf32>, vector<4x8xf32> -> vector<4x8xf32>
    %c0_38 = arith.constant 0 : index
    %c24 = arith.constant 24 : index
    %78 = vector.load %arg8[%c0_38, %c24] : memref<4x64xf32, #tpu.memory_space<vmem>>, vector<4x8xf32>
    tpu.vector_store %arg8[%c0_38, %c24], %77 {strides = array<i32>} : memref<4x64xf32, #tpu.memory_space<vmem>>, vector<4x8xf32>,
    %c0_39 = arith.constant 0 : index
    %c0_40 = arith.constant 0 : index
    %c128 = arith.constant 128 : index
    %79 = vector.load %arg2[%c0_39, %c0_40, %c128] : memref<1x4x256xf32, #tpu.memory_space<vmem>>, vector<1x4x16xf32>
    %80 = vector.shape_cast %79 : vector<1x4x16xf32> to vector<4x16xf32>
    %c0_41 = arith.constant 0 : index
    %c0_42 = arith.constant 0 : index
    %c144 = arith.constant 144 : index
    %81 = vector.load %arg2[%c0_41, %c0_42, %c144] : memref<1x4x256xf32, #tpu.memory_space<vmem>>, vector<1x4x16xf32>
    %82 = vector.shape_cast %81 : vector<1x4x16xf32> to vector<4x16xf32>
    %83 = vector.broadcast %0 : vector<4x1xf32> to vector<4x16xf32>
    %84 = arith.mulf %80, %83 : vector<4x16xf32>
    %85 = vector.broadcast %1 : vector<4x1xf32> to vector<4x16xf32>
    %86 = arith.addf %84, %85 : vector<4x16xf32>
    %cst_43 = arith.constant 0.000000e+00 : f32
    %87 = vector.broadcast %cst_43 : f32 to vector<4x16xf32>
    %88 = arith.maximumf %86, %87 : vector<4x16xf32>
    %89 = vector.broadcast %0 : vector<4x1xf32> to vector<4x16xf32>
    %90 = arith.mulf %82, %89 : vector<4x16xf32>
    %91 = vector.broadcast %1 : vector<4x1xf32> to vector<4x16xf32>
    %92 = arith.addf %90, %91 : vector<4x16xf32>
    %cst_44 = arith.constant 0.000000e+00 : f32
    %93 = vector.broadcast %cst_44 : f32 to vector<4x16xf32>
    %94 = arith.maximumf %92, %93 : vector<4x16xf32>
    %95 = arith.addf %88, %94 : vector<4x16xf32>
    %cst_45 = arith.constant dense<0.000000e+00> : vector<4x8xf32>
    %96 = tpu.matmul %95, %2, %cst_45 {dimension_numbers = #tpu.dot_dimension_numbers<[1], [0], [0], [1], [0, 0, 1, 1], [], []>} : vector<4x16xf32>, vector<16x8xf32>, vector<4x8xf32> -> vector<4x8xf32>
    %c0_46 = arith.constant 0 : index
    %c32_47 = arith.constant 32 : index
    %97 = vector.load %arg8[%c0_46, %c32_47] : memref<4x64xf32, #tpu.memory_space<vmem>>, vector<4x8xf32>
    tpu.vector_store %arg8[%c0_46, %c32_47], %96 {strides = array<i32>} : memref<4x64xf32, #tpu.memory_space<vmem>>, vector<4x8xf32>,
    %c0_48 = arith.constant 0 : index
    %c0_49 = arith.constant 0 : index
    %c160 = arith.constant 160 : index
    %98 = vector.load %arg2[%c0_48, %c0_49, %c160] : memref<1x4x256xf32, #tpu.memory_space<vmem>>, vector<1x4x16xf32>
    %99 = vector.shape_cast %98 : vector<1x4x16xf32> to vector<4x16xf32>
    %c0_50 = arith.constant 0 : index
    %c0_51 = arith.constant 0 : index
    %c176 = arith.constant 176 : index
    %100 = vector.load %arg2[%c0_50, %c0_51, %c176] : memref<1x4x256xf32, #tpu.memory_space<vmem>>, vector<1x4x16xf32>
    %101 = vector.shape_cast %100 : vector<1x4x16xf32> to vector<4x16xf32>
    %102 = vector.broadcast %0 : vector<4x1xf32> to vector<4x16xf32>
    %103 = arith.mulf %99, %102 : vector<4x16xf32>
    %104 = vector.broadcast %1 : vector<4x1xf32> to vector<4x16xf32>
    %105 = arith.addf %103, %104 : vector<4x16xf32>
    %cst_52 = arith.constant 0.000000e+00 : f32
    %106 = vector.broadcast %cst_52 : f32 to vector<4x16xf32>
    %107 = arith.maximumf %105, %106 : vector<4x16xf32>
    %108 = vector.broadcast %0 : vector<4x1xf32> to vector<4x16xf32>
    %109 = arith.mulf %101, %108 : vector<4x16xf32>
    %110 = vector.broadcast %1 : vector<4x1xf32> to vector<4x16xf32>
    %111 = arith.addf %109, %110 : vector<4x16xf32>
    %cst_53 = arith.constant 0.000000e+00 : f32
    %112 = vector.broadcast %cst_53 : f32 to vector<4x16xf32>
    %113 = arith.maximumf %111, %112 : vector<4x16xf32>
    %114 = arith.addf %107, %113 : vector<4x16xf32>
    %cst_54 = arith.constant dense<0.000000e+00> : vector<4x8xf32>
    %115 = tpu.matmul %114, %2, %cst_54 {dimension_numbers = #tpu.dot_dimension_numbers<[1], [0], [0], [1], [0, 0, 1, 1], [], []>} : vector<4x16xf32>, vector<16x8xf32>, vector<4x8xf32> -> vector<4x8xf32>
    %c0_55 = arith.constant 0 : index
    %c40 = arith.constant 40 : index
    %116 = vector.load %arg8[%c0_55, %c40] : memref<4x64xf32, #tpu.memory_space<vmem>>, vector<4x8xf32>
    tpu.vector_store %arg8[%c0_55, %c40], %115 {strides = array<i32>} : memref<4x64xf32, #tpu.memory_space<vmem>>, vector<4x8xf32>,
    %c0_56 = arith.constant 0 : index
    %c0_57 = arith.constant 0 : index
    %c192 = arith.constant 192 : index
    %117 = vector.load %arg2[%c0_56, %c0_57, %c192] : memref<1x4x256xf32, #tpu.memory_space<vmem>>, vector<1x4x16xf32>
    %118 = vector.shape_cast %117 : vector<1x4x16xf32> to vector<4x16xf32>
    %c0_58 = arith.constant 0 : index
    %c0_59 = arith.constant 0 : index
    %c208 = arith.constant 208 : index
    %119 = vector.load %arg2[%c0_58, %c0_59, %c208] : memref<1x4x256xf32, #tpu.memory_space<vmem>>, vector<1x4x16xf32>
    %120 = vector.shape_cast %119 : vector<1x4x16xf32> to vector<4x16xf32>
    %121 = vector.broadcast %0 : vector<4x1xf32> to vector<4x16xf32>
    %122 = arith.mulf %118, %121 : vector<4x16xf32>
    %123 = vector.broadcast %1 : vector<4x1xf32> to vector<4x16xf32>
    %124 = arith.addf %122, %123 : vector<4x16xf32>
    %cst_60 = arith.constant 0.000000e+00 : f32
    %125 = vector.broadcast %cst_60 : f32 to vector<4x16xf32>
    %126 = arith.maximumf %124, %125 : vector<4x16xf32>
    %127 = vector.broadcast %0 : vector<4x1xf32> to vector<4x16xf32>
    %128 = arith.mulf %120, %127 : vector<4x16xf32>
    %129 = vector.broadcast %1 : vector<4x1xf32> to vector<4x16xf32>
    %130 = arith.addf %128, %129 : vector<4x16xf32>
    %cst_61 = arith.constant 0.000000e+00 : f32
    %131 = vector.broadcast %cst_61 : f32 to vector<4x16xf32>
    %132 = arith.maximumf %130, %131 : vector<4x16xf32>
    %133 = arith.addf %126, %132 : vector<4x16xf32>
    %cst_62 = arith.constant dense<0.000000e+00> : vector<4x8xf32>
    %134 = tpu.matmul %133, %2, %cst_62 {dimension_numbers = #tpu.dot_dimension_numbers<[1], [0], [0], [1], [0, 0, 1, 1], [], []>} : vector<4x16xf32>, vector<16x8xf32>, vector<4x8xf32> -> vector<4x8xf32>
    %c0_63 = arith.constant 0 : index
    %c48_64 = arith.constant 48 : index
    %135 = vector.load %arg8[%c0_63, %c48_64] : memref<4x64xf32, #tpu.memory_space<vmem>>, vector<4x8xf32>
    tpu.vector_store %arg8[%c0_63, %c48_64], %134 {strides = array<i32>} : memref<4x64xf32, #tpu.memory_space<vmem>>, vector<4x8xf32>,
    %c0_65 = arith.constant 0 : index
    %c0_66 = arith.constant 0 : index
    %c224 = arith.constant 224 : index
    %136 = vector.load %arg2[%c0_65, %c0_66, %c224] : memref<1x4x256xf32, #tpu.memory_space<vmem>>, vector<1x4x16xf32>
    %137 = vector.shape_cast %136 : vector<1x4x16xf32> to vector<4x16xf32>
    %c0_67 = arith.constant 0 : index
    %c0_68 = arith.constant 0 : index
    %c240 = arith.constant 240 : index
    %138 = vector.load %arg2[%c0_67, %c0_68, %c240] : memref<1x4x256xf32, #tpu.memory_space<vmem>>, vector<1x4x16xf32>
    %139 = vector.shape_cast %138 : vector<1x4x16xf32> to vector<4x16xf32>
    %140 = vector.broadcast %0 : vector<4x1xf32> to vector<4x16xf32>
    %141 = arith.mulf %137, %140 : vector<4x16xf32>
    %142 = vector.broadcast %1 : vector<4x1xf32> to vector<4x16xf32>
    %143 = arith.addf %141, %142 : vector<4x16xf32>
    %cst_69 = arith.constant 0.000000e+00 : f32
    %144 = vector.broadcast %cst_69 : f32 to vector<4x16xf32>
    %145 = arith.maximumf %143, %144 : vector<4x16xf32>
    %146 = vector.broadcast %0 : vector<4x1xf32> to vector<4x16xf32>
    %147 = arith.mulf %139, %146 : vector<4x16xf32>
    %148 = vector.broadcast %1 : vector<4x1xf32> to vector<4x16xf32>
    %149 = arith.addf %147, %148 : vector<4x16xf32>
    %cst_70 = arith.constant 0.000000e+00 : f32
    %150 = vector.broadcast %cst_70 : f32 to vector<4x16xf32>
    %151 = arith.maximumf %149, %150 : vector<4x16xf32>
    %152 = arith.addf %145, %151 : vector<4x16xf32>
    %cst_71 = arith.constant dense<0.000000e+00> : vector<4x8xf32>
    %153 = tpu.matmul %152, %2, %cst_71 {dimension_numbers = #tpu.dot_dimension_numbers<[1], [0], [0], [1], [0, 0, 1, 1], [], []>} : vector<4x16xf32>, vector<16x8xf32>, vector<4x8xf32> -> vector<4x8xf32>
    %c0_72 = arith.constant 0 : index
    %c56 = arith.constant 56 : index
    %154 = vector.load %arg8[%c0_72, %c56] : memref<4x64xf32, #tpu.memory_space<vmem>>, vector<4x8xf32>
    tpu.vector_store %arg8[%c0_72, %c56], %153 {strides = array<i32>} : memref<4x64xf32, #tpu.memory_space<vmem>>, vector<4x8xf32>,
    %c0_73 = arith.constant 0 : index
    %c0_74 = arith.constant 0 : index
    %155 = vector.load %arg5[%c0_73, %c0_74] : memref<8x4xf32, #tpu.memory_space<vmem>>, vector<8x4xf32>
    %c0_75 = arith.constant 0 : index
    %c0_76 = arith.constant 0 : index
    %156 = vector.load %arg8[%c0_75, %c0_76] : memref<4x64xf32, #tpu.memory_space<vmem>>, vector<4x64xf32>
    %cst_77 = arith.constant dense<0.000000e+00> : vector<8x64xf32>
    %157 = tpu.matmul %155, %156, %cst_77 {dimension_numbers = #tpu.dot_dimension_numbers<[1], [0], [0], [1], [0, 0, 1, 1], [], []>} : vector<8x4xf32>, vector<4x64xf32>, vector<8x64xf32> -> vector<8x64xf32>
    %c0_78 = arith.constant 0 : index
    %c0_79 = arith.constant 0 : index
    %c0_80 = arith.constant 0 : index
    %158 = vector.load %arg7[%c0_78, %c0_79, %c0_80] : memref<1x8x64xf32, #tpu.memory_space<vmem>>, vector<1x8x64xf32>
    %159 = vector.shape_cast %158 : vector<1x8x64xf32> to vector<8x64xf32>
    %160 = vector.shape_cast %157 : vector<8x64xf32> to vector<1x8x64xf32>
    tpu.vector_store %arg7[%c0_78, %c0_79, %c0_80], %160 {strides = array<i32>} : memref<1x8x64xf32, #tpu.memory_space<vmem>>, vector<1x8x64xf32>,
    return
  }
  func.func @transform_0(%arg0: i32, %arg1: i32) -> (i32, i32, i32) {
    %c0_i32 = arith.constant 0 : i32
    %c0_i32_0 = arith.constant 0 : i32
    return %arg0, %c0_i32, %arg1 : i32, i32, i32
  }
  func.func @transform_1(%arg0: i32, %arg1: i32) -> (i32, i32) {
    %c0_i32 = arith.constant 0 : i32
    %c0_i32_0 = arith.constant 0 : i32
    %c0_i32_1 = arith.constant 0 : i32
    return %c0_i32, %c0_i32_0 : i32, i32
  }
  func.func @transform_2(%arg0: i32, %arg1: i32) -> (i32, i32) {
    %c0_i32 = arith.constant 0 : i32
    %c0_i32_0 = arith.constant 0 : i32
    %c0_i32_1 = arith.constant 0 : i32
    return %c0_i32, %c0_i32_0 : i32, i32
  }
  func.func @transform_3(%arg0: i32, %arg1: i32) -> (i32, i32) {
    %c0_i32 = arith.constant 0 : i32
    %c0_i32_0 = arith.constant 0 : i32
    %c0_i32_1 = arith.constant 0 : i32
    return %c0_i32, %c0_i32_0 : i32, i32
  }
  func.func @transform_4(%arg0: i32, %arg1: i32) -> (i32, i32) {
    %c0_i32 = arith.constant 0 : i32
    %c0_i32_0 = arith.constant 0 : i32
    %c0_i32_1 = arith.constant 0 : i32
    return %c0_i32, %c0_i32_0 : i32, i32
  }
  func.func @transform_5(%arg0: i32, %arg1: i32) -> (i32, i32, i32) {
    %c0_i32 = arith.constant 0 : i32
    %c0_i32_0 = arith.constant 0 : i32
    return %arg0, %c0_i32, %arg1 : i32, i32, i32
  }
}

</mosaic_0001>

<llo_original>
// kernel: tpu_custom_call.1
$region0: #{tpu_custom_call.1}
  #allocation0 [shape = 'u32[]', space=smem, size = 0x4, offset = 0x4, fixed_abs, tag = 'smem constant byte address 0x4 - core index']
  #allocation1 [shape = 'u32[144,128]{1,0:T(1,128)}', space=vmem, size = 0x12000, scoped, tag = 'internal scratch']
  #allocation2 [shape = 'f32[4,64]{1,0:T(4,128)}', space=vmem, size = 0x800, scoped, tag = 'scratch operand']
  %s0 = inlined_call_operand.vmem [shape: f32[2,4,256], index: 0, kind: input, shape index: {}]
  %s1 = inlined_call_operand.vmem [shape: f32[4,1], index: 1, kind: input, shape index: {}]
  %s2 = inlined_call_operand.vmem [shape: f32[4,1], index: 2, kind: input, shape index: {}]
  %s3 = inlined_call_operand.vmem [shape: f32[8,4], index: 3, kind: input, shape index: {}]
  %s4 = inlined_call_operand.vmem [shape: f32[16,8], index: 4, kind: input, shape index: {}]
  %s5 = inlined_call_operand.hbm [shape: f32[2,8,64], index: 5, kind: output, shape index: {}]
  %s6 = sld [smem:[#allocation0]]
  $region53: #{tpu_custom_call.1} parent=0
    _
  %s8 = ssub.s32 1, %s6
  %s9 = scalar_select 0, %s8, %s6
  $region1: #{tpu_custom_call.1} parent=0
    #allocation3 [shape = 'u8[8192]{0}', space=vmem, size = 0x2000, scoped, tag = 'output window, operand 0']
    #allocation4 [shape = 's32[2]{0}', space=sflag, size = 0x8, scoped, tag = 'scoped memory for tpu_custom_call.1']
    %10 = vsyncpa [#allocation4], 0
    %s11 = scalar_lea.sflag [#allocation4], 1
    %12 = vsyncpa %s11, 0
    loop: start=0, step=1, limit=4
    $region2: #{tpu_custom_call.1} parent=1 // loop_pre_header
      _
    $region3: #{tpu_custom_call.1} parent=1 // loop_header
      %s14 = sphi 0, %s18
      %p15 = scmp.ge.s32.totalorder %s14, 4
      %s21 = sphi 0, %s33
      %s22 = sphi 0, %s29
      %s23 = sphi 0, %s21
      %s24 = sphi 0, %s22
      %s25 = sphi 0, %s23
      %s26 = sphi 0, %s24
      %s38 = sphi 0, %s40
      %s41 = sphi 0, %s38
      %s42 = sphi 0, %s41
      %s58 = sphi 0, %s42
      %s62 = sphi 0, %s62
      %s64 = sphi 0, %s62
      %s65 = sphi 0, %s64
      %s79 = sphi 0, %s65
      %s83 = sphi 0, %s83
      %s85 = sphi 0, %s83
      %s86 = sphi 0, %s85
      %s100 = sphi 0, %s86
      %s104 = sphi 0, %s104
      %s106 = sphi 0, %s104
      %s107 = sphi 0, %s106
      %s121 = sphi 0, %s107
      %s125 = sphi 0, %s125
      %s127 = sphi 0, %s125
      %s128 = sphi 0, %s127
      %s142 = sphi 0, %s128
      %s150 = sphi 0, %s152
      %s153 = sphi 0, %s150
      %s154 = sphi 0, %s153
      %s170 = sphi 0, %s154
    $region4: #{tpu_custom_call.1} parent=1 // loop_header_branch
      %17 = sbr.rel (%p15) target = $region8
    $region5: #{tpu_custom_call.1} parent=1 // loop_body
      %s19 = ssub.s32 %s14, 1
      %s20 = ssub.s32 %s14, 2
      %s27 = sadd.s32 1, %s22
      %p28 = scmp.ge.s32.totalorder %s27, 1
      %s29 = scalar_select %p28, 0, %s27
      %s30 = sadd.s32 1, %s21
      %s31 = scalar_select %p28, %s30, %s21
      %p32 = scmp.ge.s32.totalorder %s31, 2
      %s33 = scalar_select %p32, 0, %s31
      %s34 = ssub.s32 %s21, %s33
      %s35 = ssub.s32 %s22, %s29
      %s36 = sor.u32 %s34, %s35
      %p37 = scmp.eq.s32.totalorder %s36, 0
      %s39 = sadd.s32 %s38, 1
      %s40 = scalar_select %p37, %s38, %s39
      %p43 = pneg %p37
      %p44 = scmp.eq.s32.totalorder %s14, 1
      %p45 = por %p43, %p44
      %p46 = scmp.ne.s32.totalorder %s38, %s41
      %p47 = scmp.eq.s32.totalorder %s14, 0
      %p48 = por %p46, %p47
      %p49 = scmp.ne.s32.totalorder %s38, %s41
      %p50 = scmp.eq.s32.totalorder %s19, 1
      %p51 = por %p49, %p50
      %p52 = scmp.ne.s32.totalorder %s41, %s42
      %p53 = scmp.eq.s32.totalorder %s19, 0
      %p54 = por %p52, %p53
      %p55 = scmp.ne.s32.totalorder %s41, %s42
      %p56 = scmp.eq.s32.totalorder %s20, 1
      %p57 = por %p55, %p56
      %p59 = scmp.ne.s32.totalorder %s42, %s58
      %p60 = scmp.eq.s32.totalorder %s20, 0
      %p61 = por %p59, %p60
      %s63 = sadd.s32 %s62, 1
      %p66 = scmp.eq.s32.totalorder %s14, 1
      %p67 = scmp.ne.s32.totalorder %s62, %s64
      %p68 = scmp.eq.s32.totalorder %s14, 0
      %p69 = por %p67, %p68
      %p70 = scmp.ne.s32.totalorder %s62, %s64
      %p71 = scmp.eq.s32.totalorder %s19, 1
      %p72 = por %p70, %p71
      %p73 = scmp.ne.s32.totalorder %s64, %s65
      %p74 = scmp.eq.s32.totalorder %s19, 0
      %p75 = por %p73, %p74
      %p76 = scmp.ne.s32.totalorder %s64, %s65
      %p77 = scmp.eq.s32.totalorder %s20, 1
      %p78 = por %p76, %p77
      %p80 = scmp.ne.s32.totalorder %s65, %s79
      %p81 = scmp.eq.s32.totalorder %s20, 0
      %p82 = por %p80, %p81
      %s84 = sadd.s32 %s83, 1
      %p87 = scmp.eq.s32.totalorder %s14, 1
      %p88 = scmp.ne.s32.totalorder %s83, %s85
      %p89 = scmp.eq.s32.totalorder %s14, 0
      %p90 = por %p88, %p89
      %p91 = scmp.ne.s32.totalorder %s83, %s85
      %p92 = scmp.eq.s32.totalorder %s19, 1
      %p93 = por %p91, %p92
      %p94 = scmp.ne.s32.totalorder %s85, %s86
      %p95 = scmp.eq.s32.totalorder %s19, 0
      %p96 = por %p94, %p95
      %p97 = scmp.ne.s32.totalorder %s85, %s86
      %p98 = scmp.eq.s32.totalorder %s20, 1
      %p99 = por %p97, %p98
      %p101 = scmp.ne.s32.totalorder %s86, %s100
      %p102 = scmp.eq.s32.totalorder %s20, 0
      %p103 = por %p101, %p102
      %s105 = sadd.s32 %s104, 1
      %p108 = scmp.eq.s32.totalorder %s14, 1
      %p109 = scmp.ne.s32.totalorder %s104, %s106
      %p110 = scmp.eq.s32.totalorder %s14, 0
      %p111 = por %p109, %p110
      %p112 = scmp.ne.s32.totalorder %s104, %s106
      %p113 = scmp.eq.s32.totalorder %s19, 1
      %p114 = por %p112, %p113
      %p115 = scmp.ne.s32.totalorder %s106, %s107
      %p116 = scmp.eq.s32.totalorder %s19, 0
      %p117 = por %p115, %p116
      %p118 = scmp.ne.s32.totalorder %s106, %s107
      %p119 = scmp.eq.s32.totalorder %s20, 1
      %p120 = por %p118, %p119
      %p122 = scmp.ne.s32.totalorder %s107, %s121
      %p123 = scmp.eq.s32.totalorder %s20, 0
      %p124 = por %p122, %p123
      %s126 = sadd.s32 %s125, 1
      %p129 = scmp.eq.s32.totalorder %s14, 1
      %p130 = scmp.ne.s32.totalorder %s125, %s127
      %p131 = scmp.eq.s32.totalorder %s14, 0
      %p132 = por %p130, %p131
      %p133 = scmp.ne.s32.totalorder %s125, %s127
      %p134 = scmp.eq.s32.totalorder %s19, 1
      %p135 = por %p133, %p134
      %p136 = scmp.ne.s32.totalorder %s127, %s128
      %p137 = scmp.eq.s32.totalorder %s19, 0
      %p138 = por %p136, %p137
      %p139 = scmp.ne.s32.totalorder %s127, %s128
      %p140 = scmp.eq.s32.totalorder %s20, 1
      %p141 = por %p139, %p140
      %p143 = scmp.ne.s32.totalorder %s128, %s142
      %p144 = scmp.eq.s32.totalorder %s20, 0
      %p145 = por %p143, %p144
      %s146 = ssub.s32 %s21, %s33
      %s147 = ssub.s32 %s22, %s29
      %s148 = sor.u32 %s146, %s147
      %p149 = scmp.eq.s32.totalorder %s148, 0
      %s151 = sadd.s32 %s150, 1
      %s152 = scalar_select %p149, %s150, %s151
      %p155 = pneg %p149
      %p156 = scmp.eq.s32.totalorder %s14, 1
      %p157 = por %p155, %p156
      %p158 = scmp.ne.s32.totalorder %s150, %s153
      %p159 = scmp.eq.s32.totalorder %s14, 0
      %p160 = por %p158, %p159
      %p161 = scmp.ne.s32.totalorder %s150, %s153
      %p162 = scmp.eq.s32.totalorder %s19, 1
      %p163 = por %p161, %p162
      %p164 = scmp.ne.s32.totalorder %s153, %s154
      %p165 = scmp.eq.s32.totalorder %s19, 0
      %p166 = por %p164, %p165
      %p167 = scmp.ne.s32.totalorder %s153, %s154
      %p168 = scmp.eq.s32.totalorder %s20, 1
      %p169 = por %p167, %p168
      %p171 = scmp.ne.s32.totalorder %s154, %s170
      %p172 = scmp.eq.s32.totalorder %s20, 0
      %p173 = por %p171, %p172
      %p174 = scmp.le.s32.totalorder 1, %s14
      %p175 = scmp.lt.s32.totalorder %s14, 3
      %p176 = pnand %p174, %p175
      %p177 = pneg %p176
      // Predicated region
      $region9: #{tpu_custom_call.1} parent=5 // pred_check
        _
      $region10: #{tpu_custom_call.1} parent=5 // pred_check_branch
        %179 = sbr.rel (%p176) target = $region12
      $region11: #{tpu_custom_call.1} parent=5 // pred_region
        %s180 = ssub.s32 %s14, 1
        // Predicated region
        $region13: #{tpu_custom_call.1} parent=11 // pred_check
          %p181 = pneg %p75
        $region14: #{tpu_custom_call.1} parent=11 // pred_check_branch
          %183 = sbr.rel (%p181) target = $region16
        $region15: #{tpu_custom_call.1} parent=11 // pred_region
          _
        $region16: #{tpu_custom_call.1} parent=11 // pred_fallthru
          _
        // Predicated region
        $region17: #{tpu_custom_call.1} parent=11 // pred_check
          %p184 = pneg %p96
        $region18: #{tpu_custom_call.1} parent=11 // pred_check_branch
          %186 = sbr.rel (%p184) target = $region20
        $region19: #{tpu_custom_call.1} parent=11 // pred_region
          _
        $region20: #{tpu_custom_call.1} parent=11 // pred_fallthru
          _
        // Predicated region
        $region21: #{tpu_custom_call.1} parent=11 // pred_check
          %p187 = pneg %p117
        $region22: #{tpu_custom_call.1} parent=11 // pred_check_branch
          %189 = sbr.rel (%p187) target = $region24
        $region23: #{tpu_custom_call.1} parent=11 // pred_region
          _
        $region24: #{tpu_custom_call.1} parent=11 // pred_fallthru
          _
        // Predicated region
        $region25: #{tpu_custom_call.1} parent=11 // pred_check
          %p190 = pneg %p138
        $region26: #{tpu_custom_call.1} parent=11 // pred_check_branch
          %192 = sbr.rel (%p190) target = $region28
        $region27: #{tpu_custom_call.1} parent=11 // pred_region
          _
        $region28: #{tpu_custom_call.1} parent=11 // pred_fallthru
          _
      $region12: #{tpu_custom_call.1} parent=5 // pred_fallthru
        _
      %p193 = scmp.lt.s32.totalorder %s14, 2
      // Predicated region
      $region29: #{tpu_custom_call.1} parent=5 // pred_check
        %p194 = pneg %p193
      $region30: #{tpu_custom_call.1} parent=5 // pred_check_branch
        %196 = sbr.rel (%p194) target = $region32
      $region31: #{tpu_custom_call.1} parent=5 // pred_region
        // Predicated region
        $region33: #{tpu_custom_call.1} parent=31 // pred_check
          %p197 = pneg %p48
        $region34: #{tpu_custom_call.1} parent=31 // pred_check_branch
          %199 = sbr.rel (%p197) target = $region36
        $region35: #{tpu_custom_call.1} parent=31 // pred_region
          %s200 = smul.u32 2, %s22
          %p201 = scmp.lt.s32.totalorder %s21, 1
          %s202 = scalar_select %p201, %s21, 1
          %p203 = scmp.lt.s32.totalorder %s200, 1
          %s204 = scalar_select %p203, %s200, 1
          %s205 = smul.addr %s202, 2
          %s206 = sadd.s32 %s204, %s205
          %s207 = smul.addr %s206, 4
          %s208 = scalar_lea.vmem %s0, %s207
          %s209 = smul.u32 2, %s22
        $region36: #{tpu_custom_call.1} parent=31 // pred_fallthru
          _
      $region32: #{tpu_custom_call.1} parent=5 // pred_fallthru
        _
      %p210 = scmp.le.s32.totalorder 1, %s14
      %p211 = scmp.lt.s32.totalorder %s14, 3
      %p212 = pnand %p210, %p211
      %p213 = pneg %p212
      // Predicated region
      $region37: #{tpu_custom_call.1} parent=5 // pred_check
        _
      $region38: #{tpu_custom_call.1} parent=5 // pred_check_branch
        %215 = sbr.rel (%p212) target = $region40
      $region39: #{tpu_custom_call.1} parent=5 // pred_region
        %s216 = ssub.s32 %s14, 1
        %s217 = smul.u32 2, %s24
        %p218 = scmp.lt.s32.totalorder %s23, 1
        %s219 = scalar_select %p218, %s23, 1
        %p220 = scmp.lt.s32.totalorder %s217, 1
        %s221 = scalar_select %p220, %s217, 1
        %s222 = smul.addr %s219, 2
        %s223 = sadd.s32 %s221, %s222
        %s224 = smul.addr %s223, 4
        %s225 = scalar_lea.vmem %s0, %s224
        %p226 = pneg %p54
        %p227 = pneg %p51
        %p228 = pneg %p75
        %p229 = pneg %p72
        %p230 = pneg %p96
        %p231 = pneg %p93
        %p232 = pneg %p117
        %p233 = pneg %p114
        %p234 = pneg %p138
        %p235 = pneg %p135
        %p236 = pneg %p166
        %p237 = pneg %p163
        %s238 = sand.u32 %s153, 1
        %s239 = scalar_lea.sflag [#allocation4], %s238
        %s240 = sand.u32 %s153, 1
        %s241 = smul.addr %s240, 8
        %s242 = scalar_lea.vmem [#allocation3], %s241
        %s243 = smul.u32 2, %s24
        %p244 = scmp.lt.s32.totalorder %s23, 1
        %s245 = scalar_select %p244, %s23, 1
        %p246 = scmp.lt.s32.totalorder %s243, 1
        %s247 = scalar_select %p246, %s243, 1
        %s248 = smul.addr %s245, 2
        %s249 = sadd.s32 %s247, %s248
        %s250 = smul.addr %s249, 4
        %s251 = scalar_lea.vmem %s0, %s250
        %s252 = smul.u32 2, %s24
        %v253 = vld [vmem:[%s1] sm:$0xf]
        %v254 = vld [vmem:[%s2] sm:$0xf]
        %v255 = vld [vmem:[%s4] sm:$0xff]
        %v256 = vld [vmem:[%s4 + $0x8] sm:$0xff]
        %v257 = vld [vmem:[%s251] sm:$0xf]
        %259 = vset.pattern.permute.xlu0 0
        %260 = vperm.xlu0 %259, %v253
        %v261 = vpop.permute.xlu0 %260
        %v263 = vmul.f32 %v257, %v261
        %265 = vset.pattern.permute.xlu0 0
        %266 = vperm.xlu0 %265, %v254
        %v267 = vpop.permute.xlu0 %266
        %v269 = vadd.f32 %v263, %v267
        %v270 = vmax.f32 %v269, 0.0
        %272 = vrot.lane.b32.xlu0 %v270, 112
        %v273 = vpop.permute.xlu0 %272
        %v275 = vadd.f32 %v270, %v273
        %vm276 = vcmask 130048
        %v278 = vsel %vm276, %v275, 0
        %280 = vmatprep.subr.mxu0 0.0
        %281 = vmatpush1.msra.mxu0 %v255
        %282 = vmatprep.subr.mxu0 0.0
        %283 = vmatpush1.msra.mxu0 %v256
        %284 = vmatprep.subr.mxu0 0.0
        %285 = vmatpush1.msra.mxu0 0.0
        %286 = vmatprep.subr.mxu0 0.0
        %287 = vmatpush1.msra.mxu0 0.0
        %288 = vmatprep.subr.mxu0 0.0
        %289 = vmatpush1.msra.mxu0 0.0
        %290 = vmatprep.subr.mxu0 0.0
        %291 = vmatpush1.msra.mxu0 0.0
        %292 = vmatprep.subr.mxu0 0.0
        %293 = vmatpush1.msra.mxu0 0.0
        %294 = vmatprep.subr.mxu0 0.0
        %295 = vmatpush1.msra.mxu0 0.0
        %296 = vmatprep.subr.mxu0 0.0
        %297 = vmatpush1.msra.mxu0 0.0
        %298 = vmatprep.subr.mxu0 0.0
        %299 = vmatpush1.msra.mxu0 0.0
        %300 = vmatprep.subr.mxu0 0.0
        %301 = vmatpush1.msra.mxu0 0.0
        %302 = vmatprep.subr.mxu0 0.0
        %303 = vmatpush1.msra.mxu0 0.0
        %304 = vmatprep.subr.mxu0 0.0
        %305 = vmatpush1.msra.mxu0 0.0
        %306 = vmatprep.subr.mxu0 0.0
        %307 = vmatpush1.msra.mxu0 0.0
        %308 = vmatprep.subr.mxu0 0.0
        %309 = vmatpush1.msra.mxu0 0.0
        %310 = vmatprep.subr.mxu0 0.0
        %311 = vmatpush1.msra.mxu0 0.0
        %312 = vmatprep.subr.mxu0 0.0
        %313 = vmatpush1.msra.mxu0 0.0
        %314 = vmatprep.subr.mxu0 0.0
        %315 = vmatpush1.msra.mxu0 0.0
        %316 = vmatprep.subr.mxu0 0.0
        %317 = vmatpush1.msra.mxu0 0.0
        %318 = vmatprep.subr.mxu0 0.0
        %319 = vmatpush1.msra.mxu0 0.0
        %320 = vmatprep.subr.mxu0 0.0
        %321 = vmatpush1.msra.mxu0 0.0
        %322 = vmatprep.subr.mxu0 0.0
        %323 = vmatpush1.msra.mxu0 0.0
        %324 = vmatprep.subr.mxu0 0.0
        %325 = vmatpush1.msra.mxu0 0.0
        %326 = vmatprep.subr.mxu0 0.0
        %327 = vmatpush1.msra.mxu0 0.0
        %328 = vmatprep.subr.mxu0 0.0
        %329 = vmatpush1.msra.mxu0 0.0
        %330 = vmatprep.subr.mxu0 0.0
        %331 = vmatpush1.msra.mxu0 0.0
        %332 = vmatprep.subr.mxu0 0.0
        %333 = vmatpush1.msra.mxu0 0.0
        %334 = vmatprep.subr.mxu0 0.0
        %335 = vmatpush1.msra.mxu0 0.0
        %336 = vmatprep.subr.mxu0 0.0
        %337 = vmatpush1.msra.mxu0 0.0
        %338 = vmatprep.subr.mxu0 0.0
        %339 = vmatpush1.msra.mxu0 0.0
        %340 = vmatprep.subr.mxu0 0.0
        %341 = vmatpush1.msra.mxu0 0.0
        %342 = vmatprep.subr.mxu0 0.0
        %343 = vmatpush1.msra.mxu0 0.0
        %344 = vmatprep.mubr.f32.mxu0 0.0
        %345 = vmatmul.mubr.f32.gmra.mrb[0].mxu0 %v278
        %v346 = vpop.f32.mrb[0].mxu0
        %v347 = vadd.f32 0.0, %v346
        %v348 = vpop.f32.mrb[0].mxu0
        %349 = vdwg.mxu0
        %vm350 = vcmask 60416
        %351 = vst.msk [vmem:[#allocation2] sm:$0xf] %vm350, %v347
        %v352 = vld [vmem:[%s251] sm:$0xf]
        %v353 = vmul.f32 %v352, %v261
        %v354 = vadd.f32 %v353, %v267
        %v355 = vmax.f32 %v354, 0.0
        %357 = vrot.lane.b32.xlu0 %v355, 112
        %v358 = vpop.permute.xlu0 %357
        %v360 = vadd.f32 %v355, %v358
        %362 = vrot.lane.b32.xlu0 %v360, 96
        %v363 = vpop.permute.xlu0 %362
        %v364 = vsel %vm276, %v363, 0
        %366 = vmatprep.subr.mxu0 0.0
        %367 = vmatpush1.msra.mxu0 %v255
        %368 = vmatprep.subr.mxu0 0.0
        %369 = vmatpush1.msra.mxu0 %v256
        %370 = vmatprep.subr.mxu0 0.0
        %371 = vmatpush1.msra.mxu0 0.0
        %372 = vmatprep.subr.mxu0 0.0
        %373 = vmatpush1.msra.mxu0 0.0
        %374 = vmatprep.subr.mxu0 0.0
        %375 = vmatpush1.msra.mxu0 0.0
        %376 = vmatprep.subr.mxu0 0.0
        %377 = vmatpush1.msra.mxu0 0.0
        %378 = vmatprep.subr.mxu0 0.0
        %379 = vmatpush1.msra.mxu0 0.0
        %380 = vmatprep.subr.mxu0 0.0
        %381 = vmatpush1.msra.mxu0 0.0
        %382 = vmatprep.subr.mxu0 0.0
        %383 = vmatpush1.msra.mxu0 0.0
        %384 = vmatprep.subr.mxu0 0.0
        %385 = vmatpush1.msra.mxu0 0.0
        %386 = vmatprep.subr.mxu0 0.0
        %387 = vmatpush1.msra.mxu0 0.0
        %388 = vmatprep.subr.mxu0 0.0
        %389 = vmatpush1.msra.mxu0 0.0
        %390 = vmatprep.subr.mxu0 0.0
        %391 = vmatpush1.msra.mxu0 0.0
        %392 = vmatprep.subr.mxu0 0.0
        %393 = vmatpush1.msra.mxu0 0.0
        %394 = vmatprep.subr.mxu0 0.0
        %395 = vmatpush1.msra.mxu0 0.0
        %396 = vmatprep.subr.mxu0 0.0
        %397 = vmatpush1.msra.mxu0 0.0
        %398 = vmatprep.subr.mxu0 0.0
        %399 = vmatpush1.msra.mxu0 0.0
        %400 = vmatprep.subr.mxu0 0.0
        %401 = vmatpush1.msra.mxu0 0.0
        %402 = vmatprep.subr.mxu0 0.0
        %403 = vmatpush1.msra.mxu0 0.0
        %404 = vmatprep.subr.mxu0 0.0
        %405 = vmatpush1.msra.mxu0 0.0
        %406 = vmatprep.subr.mxu0 0.0
        %407 = vmatpush1.msra.mxu0 0.0
        %408 = vmatprep.subr.mxu0 0.0
        %409 = vmatpush1.msra.mxu0 0.0
        %410 = vmatprep.subr.mxu0 0.0
        %411 = vmatpush1.msra.mxu0 0.0
        %412 = vmatprep.subr.mxu0 0.0
        %413 = vmatpush1.msra.mxu0 0.0
        %414 = vmatprep.subr.mxu0 0.0
        %415 = vmatpush1.msra.mxu0 0.0
        %416 = vmatprep.subr.mxu0 0.0
        %417 = vmatpush1.msra.mxu0 0.0
        %418 = vmatprep.subr.mxu0 0.0
        %419 = vmatpush1.msra.mxu0 0.0
        %420 = vmatprep.subr.mxu0 0.0
        %421 = vmatpush1.msra.mxu0 0.0
        %422 = vmatprep.subr.mxu0 0.0
        %423 = vmatpush1.msra.mxu0 0.0
        %424 = vmatprep.subr.mxu0 0.0
        %425 = vmatpush1.msra.mxu0 0.0
        %426 = vmatprep.subr.mxu0 0.0
        %427 = vmatpush1.msra.mxu0 0.0
        %428 = vmatprep.subr.mxu0 0.0
        %429 = vmatpush1.msra.mxu0 0.0
        %430 = vmatprep.mubr.f32.mxu0 0.0
        %431 = vmatmul.mubr.f32.gmra.mrb[0].mxu0 %v364
        %v432 = vpop.f32.mrb[0].mxu0
        %v433 = vadd.f32 0.0, %v432
        %v434 = vpop.f32.mrb[0].mxu0
        %435 = vdwg.mxu0
        %437 = vrot.lane.b32.xlu0 %v433, 8
        %v438 = vpop.permute.xlu0 %437
        %vm440 = vcmask 126016
        %441 = vst.msk [vmem:[#allocation2] sm:$0xf] %vm440, %v438
        %v442 = vld [vmem:[%s251] sm:$0xf]
        %v443 = vmul.f32 %v442, %v261
        %v444 = vadd.f32 %v443, %v267
        %v445 = vmax.f32 %v444, 0.0
        %447 = vrot.lane.b32.xlu0 %v445, 112
        %v448 = vpop.permute.xlu0 %447
        %v450 = vadd.f32 %v445, %v448
        %452 = vrot.lane.b32.xlu0 %v450, 64
        %v453 = vpop.permute.xlu0 %452
        %v454 = vsel %vm276, %v453, 0
        %456 = vmatprep.subr.mxu0 0.0
        %457 = vmatpush1.msra.mxu0 %v255
        %458 = vmatprep.subr.mxu0 0.0
        %459 = vmatpush1.msra.mxu0 %v256
        %460 = vmatprep.subr.mxu0 0.0
        %461 = vmatpush1.msra.mxu0 0.0
        %462 = vmatprep.subr.mxu0 0.0
        %463 = vmatpush1.msra.mxu0 0.0
        %464 = vmatprep.subr.mxu0 0.0
        %465 = vmatpush1.msra.mxu0 0.0
        %466 = vmatprep.subr.mxu0 0.0
        %467 = vmatpush1.msra.mxu0 0.0
        %468 = vmatprep.subr.mxu0 0.0
        %469 = vmatpush1.msra.mxu0 0.0
        %470 = vmatprep.subr.mxu0 0.0
        %471 = vmatpush1.msra.mxu0 0.0
        %472 = vmatprep.subr.mxu0 0.0
        %473 = vmatpush1.msra.mxu0 0.0
        %474 = vmatprep.subr.mxu0 0.0
        %475 = vmatpush1.msra.mxu0 0.0
        %476 = vmatprep.subr.mxu0 0.0
        %477 = vmatpush1.msra.mxu0 0.0
        %478 = vmatprep.subr.mxu0 0.0
        %479 = vmatpush1.msra.mxu0 0.0
        %480 = vmatprep.subr.mxu0 0.0
        %481 = vmatpush1.msra.mxu0 0.0
        %482 = vmatprep.subr.mxu0 0.0
        %483 = vmatpush1.msra.mxu0 0.0
        %484 = vmatprep.subr.mxu0 0.0
        %485 = vmatpush1.msra.mxu0 0.0
        %486 = vmatprep.subr.mxu0 0.0
        %487 = vmatpush1.msra.mxu0 0.0
        %488 = vmatprep.subr.mxu0 0.0
        %489 = vmatpush1.msra.mxu0 0.0
        %490 = vmatprep.subr.mxu0 0.0
        %491 = vmatpush1.msra.mxu0 0.0
        %492 = vmatprep.subr.mxu0 0.0
        %493 = vmatpush1.msra.mxu0 0.0
        %494 = vmatprep.subr.mxu0 0.0
        %495 = vmatpush1.msra.mxu0 0.0
        %496 = vmatprep.subr.mxu0 0.0
        %497 = vmatpush1.msra.mxu0 0.0
        %498 = vmatprep.subr.mxu0 0.0
        %499 = vmatpush1.msra.mxu0 0.0
        %500 = vmatprep.subr.mxu0 0.0
        %501 = vmatpush1.msra.mxu0 0.0
        %502 = vmatprep.subr.mxu0 0.0
        %503 = vmatpush1.msra.mxu0 0.0
        %504 = vmatprep.subr.mxu0 0.0
        %505 = vmatpush1.msra.mxu0 0.0
        %506 = vmatprep.subr.mxu0 0.0
        %507 = vmatpush1.msra.mxu0 0.0
        %508 = vmatprep.subr.mxu0 0.0
        %509 = vmatpush1.msra.mxu0 0.0
        %510 = vmatprep.subr.mxu0 0.0
        %511 = vmatpush1.msra.mxu0 0.0
        %512 = vmatprep.subr.mxu0 0.0
        %513 = vmatpush1.msra.mxu0 0.0
        %514 = vmatprep.subr.mxu0 0.0
        %515 = vmatpush1.msra.mxu0 0.0
        %516 = vmatprep.subr.mxu0 0.0
        %517 = vmatpush1.msra.mxu0 0.0
        %518 = vmatprep.subr.mxu0 0.0
        %519 = vmatpush1.msra.mxu0 0.0
        %520 = vmatprep.mubr.f32.mxu0 0.0
        %521 = vmatmul.mubr.f32.gmra.mrb[0].mxu0 %v454
        %v522 = vpop.f32.mrb[0].mxu0
        %v523 = vadd.f32 0.0, %v522
        %v524 = vpop.f32.mrb[0].mxu0
        %525 = vdwg.mxu0
        %527 = vrot.lane.b32.xlu0 %v523, 16
        %v528 = vpop.permute.xlu0 %527
        %vm530 = vcmask 191616
        %531 = vst.msk [vmem:[#allocation2] sm:$0xf] %vm530, %v528
        %v532 = vld [vmem:[%s251] sm:$0xf]
        %v533 = vmul.f32 %v532, %v261
        %v534 = vadd.f32 %v533, %v267
        %v535 = vmax.f32 %v534, 0.0
        %537 = vrot.lane.b32.xlu0 %v535, 112
        %v538 = vpop.permute.xlu0 %537
        %v540 = vadd.f32 %v535, %v538
        %542 = vrot.lane.b32.xlu0 %v540, 32
        %v543 = vpop.permute.xlu0 %542
        %v544 = vsel %vm276, %v543, 0
        %546 = vmatprep.subr.mxu0 0.0
        %547 = vmatpush1.msra.mxu0 %v255
        %548 = vmatprep.subr.mxu0 0.0
        %549 = vmatpush1.msra.mxu0 %v256
        %550 = vmatprep.subr.mxu0 0.0
        %551 = vmatpush1.msra.mxu0 0.0
        %552 = vmatprep.subr.mxu0 0.0
        %553 = vmatpush1.msra.mxu0 0.0
        %554 = vmatprep.subr.mxu0 0.0
        %555 = vmatpush1.msra.mxu0 0.0
        %556 = vmatprep.subr.mxu0 0.0
        %557 = vmatpush1.msra.mxu0 0.0
        %558 = vmatprep.subr.mxu0 0.0
        %559 = vmatpush1.msra.mxu0 0.0
        %560 = vmatprep.subr.mxu0 0.0
        %561 = vmatpush1.msra.mxu0 0.0
        %562 = vmatprep.subr.mxu0 0.0
        %563 = vmatpush1.msra.mxu0 0.0
        %564 = vmatprep.subr.mxu0 0.0
        %565 = vmatpush1.msra.mxu0 0.0
        %566 = vmatprep.subr.mxu0 0.0
        %567 = vmatpush1.msra.mxu0 0.0
        %568 = vmatprep.subr.mxu0 0.0
        %569 = vmatpush1.msra.mxu0 0.0
        %570 = vmatprep.subr.mxu0 0.0
        %571 = vmatpush1.msra.mxu0 0.0
        %572 = vmatprep.subr.mxu0 0.0
        %573 = vmatpush1.msra.mxu0 0.0
        %574 = vmatprep.subr.mxu0 0.0
        %575 = vmatpush1.msra.mxu0 0.0
        %576 = vmatprep.subr.mxu0 0.0
        %577 = vmatpush1.msra.mxu0 0.0
        %578 = vmatprep.subr.mxu0 0.0
        %579 = vmatpush1.msra.mxu0 0.0
        %580 = vmatprep.subr.mxu0 0.0
        %581 = vmatpush1.msra.mxu0 0.0
        %582 = vmatprep.subr.mxu0 0.0
        %583 = vmatpush1.msra.mxu0 0.0
        %584 = vmatprep.subr.mxu0 0.0
        %585 = vmatpush1.msra.mxu0 0.0
        %586 = vmatprep.subr.mxu0 0.0
        %587 = vmatpush1.msra.mxu0 0.0
        %588 = vmatprep.subr.mxu0 0.0
        %589 = vmatpush1.msra.mxu0 0.0
        %590 = vmatprep.subr.mxu0 0.0
        %591 = vmatpush1.msra.mxu0 0.0
        %592 = vmatprep.subr.mxu0 0.0
        %593 = vmatpush1.msra.mxu0 0.0
        %594 = vmatprep.subr.mxu0 0.0
        %595 = vmatpush1.msra.mxu0 0.0
        %596 = vmatprep.subr.mxu0 0.0
        %597 = vmatpush1.msra.mxu0 0.0
        %598 = vmatprep.subr.mxu0 0.0
        %599 = vmatpush1.msra.mxu0 0.0
        %600 = vmatprep.subr.mxu0 0.0
        %601 = vmatpush1.msra.mxu0 0.0
        %602 = vmatprep.subr.mxu0 0.0
        %603 = vmatpush1.msra.mxu0 0.0
        %604 = vmatprep.subr.mxu0 0.0
        %605 = vmatpush1.msra.mxu0 0.0
        %606 = vmatprep.subr.mxu0 0.0
        %607 = vmatpush1.msra.mxu0 0.0
        %608 = vmatprep.subr.mxu0 0.0
        %609 = vmatpush1.msra.mxu0 0.0
        %610 = vmatprep.mubr.f32.mxu0 0.0
        %611 = vmatmul.mubr.f32.gmra.mrb[0].mxu0 %v544
        %v612 = vpop.f32.mrb[0].mxu0
        %v613 = vadd.f32 0.0, %v612
        %v614 = vpop.f32.mrb[0].mxu0
        %615 = vdwg.mxu0
        %617 = vrot.lane.b32.xlu0 %v613, 24
        %v618 = vpop.permute.xlu0 %617
        %vm620 = vcmask 257216
        %621 = vst.msk [vmem:[#allocation2] sm:$0xf] %vm620, %v618
        %v622 = vld [vmem:[%s251 + $0x4] sm:$0xf]
        %v623 = vmul.f32 %v622, %v261
        %v624 = vadd.f32 %v623, %v267
        %v625 = vmax.f32 %v624, 0.0
        %627 = vrot.lane.b32.xlu0 %v625, 112
        %v628 = vpop.permute.xlu0 %627
        %v630 = vadd.f32 %v625, %v628
        %v632 = vsel %vm276, %v630, 0
        %634 = vmatprep.subr.mxu0 0.0
        %635 = vmatpush1.msra.mxu0 %v255
        %636 = vmatprep.subr.mxu0 0.0
        %637 = vmatpush1.msra.mxu0 %v256
        %638 = vmatprep.subr.mxu0 0.0
        %639 = vmatpush1.msra.mxu0 0.0
        %640 = vmatprep.subr.mxu0 0.0
        %641 = vmatpush1.msra.mxu0 0.0
        %642 = vmatprep.subr.mxu0 0.0
        %643 = vmatpush1.msra.mxu0 0.0
        %644 = vmatprep.subr.mxu0 0.0
        %645 = vmatpush1.msra.mxu0 0.0
        %646 = vmatprep.subr.mxu0 0.0
        %647 = vmatpush1.msra.mxu0 0.0
        %648 = vmatprep.subr.mxu0 0.0
        %649 = vmatpush1.msra.mxu0 0.0
        %650 = vmatprep.subr.mxu0 0.0
        %651 = vmatpush1.msra.mxu0 0.0
        %652 = vmatprep.subr.mxu0 0.0
        %653 = vmatpush1.msra.mxu0 0.0
        %654 = vmatprep.subr.mxu0 0.0
        %655 = vmatpush1.msra.mxu0 0.0
        %656 = vmatprep.subr.mxu0 0.0
        %657 = vmatpush1.msra.mxu0 0.0
        %658 = vmatprep.subr.mxu0 0.0
        %659 = vmatpush1.msra.mxu0 0.0
        %660 = vmatprep.subr.mxu0 0.0
        %661 = vmatpush1.msra.mxu0 0.0
        %662 = vmatprep.subr.mxu0 0.0
        %663 = vmatpush1.msra.mxu0 0.0
        %664 = vmatprep.subr.mxu0 0.0
        %665 = vmatpush1.msra.mxu0 0.0
        %666 = vmatprep.subr.mxu0 0.0
        %667 = vmatpush1.msra.mxu0 0.0
        %668 = vmatprep.subr.mxu0 0.0
        %669 = vmatpush1.msra.mxu0 0.0
        %670 = vmatprep.subr.mxu0 0.0
        %671 = vmatpush1.msra.mxu0 0.0
        %672 = vmatprep.subr.mxu0 0.0
        %673 = vmatpush1.msra.mxu0 0.0
        %674 = vmatprep.subr.mxu0 0.0
        %675 = vmatpush1.msra.mxu0 0.0
        %676 = vmatprep.subr.mxu0 0.0
        %677 = vmatpush1.msra.mxu0 0.0
        %678 = vmatprep.subr.mxu0 0.0
        %679 = vmatpush1.msra.mxu0 0.0
        %680 = vmatprep.subr.mxu0 0.0
        %681 = vmatpush1.msra.mxu0 0.0
        %682 = vmatprep.subr.mxu0 0.0
        %683 = vmatpush1.msra.mxu0 0.0
        %684 = vmatprep.subr.mxu0 0.0
        %685 = vmatpush1.msra.mxu0 0.0
        %686 = vmatprep.subr.mxu0 0.0
        %687 = vmatpush1.msra.mxu0 0.0
        %688 = vmatprep.subr.mxu0 0.0
        %689 = vmatpush1.msra.mxu0 0.0
        %690 = vmatprep.subr.mxu0 0.0
        %691 = vmatpush1.msra.mxu0 0.0
        %692 = vmatprep.subr.mxu0 0.0
        %693 = vmatpush1.msra.mxu0 0.0
        %694 = vmatprep.subr.mxu0 0.0
        %695 = vmatpush1.msra.mxu0 0.0
        %696 = vmatprep.subr.mxu0 0.0
        %697 = vmatpush1.msra.mxu0 0.0
        %698 = vmatprep.mubr.f32.mxu0 0.0
        %699 = vmatmul.mubr.f32.gmra.mrb[0].mxu0 %v632
        %v700 = vpop.f32.mrb[0].mxu0
        %v701 = vadd.f32 0.0, %v700
        %v702 = vpop.f32.mrb[0].mxu0
        %703 = vdwg.mxu0
        %705 = vrot.lane.b32.xlu0 %v701, 32
        %v706 = vpop.permute.xlu0 %705
        %vm708 = vcmask 322816
        %709 = vst.msk [vmem:[#allocation2] sm:$0xf] %vm708, %v706
        %v710 = vld [vmem:[%s251 + $0x4] sm:$0xf]
        %v711 = vmul.f32 %v710, %v261
        %v712 = vadd.f32 %v711, %v267
        %v713 = vmax.f32 %v712, 0.0
        %715 = vrot.lane.b32.xlu0 %v713, 112
        %v716 = vpop.permute.xlu0 %715
        %v718 = vadd.f32 %v713, %v716
        %720 = vrot.lane.b32.xlu0 %v718, 96
        %v721 = vpop.permute.xlu0 %720
        %v722 = vsel %vm276, %v721, 0
        %724 = vmatprep.subr.mxu0 0.0
        %725 = vmatpush1.msra.mxu0 %v255
        %726 = vmatprep.subr.mxu0 0.0
        %727 = vmatpush1.msra.mxu0 %v256
        %728 = vmatprep.subr.mxu0 0.0
        %729 = vmatpush1.msra.mxu0 0.0
        %730 = vmatprep.subr.mxu0 0.0
        %731 = vmatpush1.msra.mxu0 0.0
        %732 = vmatprep.subr.mxu0 0.0
        %733 = vmatpush1.msra.mxu0 0.0
        %734 = vmatprep.subr.mxu0 0.0
        %735 = vmatpush1.msra.mxu0 0.0
        %736 = vmatprep.subr.mxu0 0.0
        %737 = vmatpush1.msra.mxu0 0.0
        %738 = vmatprep.subr.mxu0 0.0
        %739 = vmatpush1.msra.mxu0 0.0
        %740 = vmatprep.subr.mxu0 0.0
        %741 = vmatpush1.msra.mxu0 0.0
        %742 = vmatprep.subr.mxu0 0.0
        %743 = vmatpush1.msra.mxu0 0.0
        %744 = vmatprep.subr.mxu0 0.0
        %745 = vmatpush1.msra.mxu0 0.0
        %746 = vmatprep.subr.mxu0 0.0
        %747 = vmatpush1.msra.mxu0 0.0
        %748 = vmatprep.subr.mxu0 0.0
        %749 = vmatpush1.msra.mxu0 0.0
        %750 = vmatprep.subr.mxu0 0.0
        %751 = vmatpush1.msra.mxu0 0.0
        %752 = vmatprep.subr.mxu0 0.0
        %753 = vmatpush1.msra.mxu0 0.0
        %754 = vmatprep.subr.mxu0 0.0
        %755 = vmatpush1.msra.mxu0 0.0
        %756 = vmatprep.subr.mxu0 0.0
        %757 = vmatpush1.msra.mxu0 0.0
        %758 = vmatprep.subr.mxu0 0.0
        %759 = vmatpush1.msra.mxu0 0.0
        %760 = vmatprep.subr.mxu0 0.0
        %761 = vmatpush1.msra.mxu0 0.0
        %762 = vmatprep.subr.mxu0 0.0
        %763 = vmatpush1.msra.mxu0 0.0
        %764 = vmatprep.subr.mxu0 0.0
        %765 = vmatpush1.msra.mxu0 0.0
        %766 = vmatprep.subr.mxu0 0.0
        %767 = vmatpush1.msra.mxu0 0.0
        %768 = vmatprep.subr.mxu0 0.0
        %769 = vmatpush1.msra.mxu0 0.0
        %770 = vmatprep.subr.mxu0 0.0
        %771 = vmatpush1.msra.mxu0 0.0
        %772 = vmatprep.subr.mxu0 0.0
        %773 = vmatpush1.msra.mxu0 0.0
        %774 = vmatprep.subr.mxu0 0.0
        %775 = vmatpush1.msra.mxu0 0.0
        %776 = vmatprep.subr.mxu0 0.0
        %777 = vmatpush1.msra.mxu0 0.0
        %778 = vmatprep.subr.mxu0 0.0
        %779 = vmatpush1.msra.mxu0 0.0
        %780 = vmatprep.subr.mxu0 0.0
        %781 = vmatpush1.msra.mxu0 0.0
        %782 = vmatprep.subr.mxu0 0.0
        %783 = vmatpush1.msra.mxu0 0.0
        %784 = vmatprep.subr.mxu0 0.0
        %785 = vmatpush1.msra.mxu0 0.0
        %786 = vmatprep.subr.mxu0 0.0
        %787 = vmatpush1.msra.mxu0 0.0
        %788 = vmatprep.mubr.f32.mxu0 0.0
        %789 = vmatmul.mubr.f32.gmra.mrb[0].mxu0 %v722
        %v790 = vpop.f32.mrb[0].mxu0
        %v791 = vadd.f32 0.0, %v790
        %v792 = vpop.f32.mrb[0].mxu0
        %793 = vdwg.mxu0
        %795 = vrot.lane.b32.xlu0 %v791, 40
        %v796 = vpop.permute.xlu0 %795
        %vm798 = vcmask 388416
        %799 = vst.msk [vmem:[#allocation2] sm:$0xf] %vm798, %v796
        %v800 = vld [vmem:[%s251 + $0x4] sm:$0xf]
        %v801 = vmul.f32 %v800, %v261
        %v802 = vadd.f32 %v801, %v267
        %v803 = vmax.f32 %v802, 0.0
        %805 = vrot.lane.b32.xlu0 %v803, 112
        %v806 = vpop.permute.xlu0 %805
        %v808 = vadd.f32 %v803, %v806
        %810 = vrot.lane.b32.xlu0 %v808, 64
        %v811 = vpop.permute.xlu0 %810
        %v812 = vsel %vm276, %v811, 0
        %814 = vmatprep.subr.mxu0 0.0
        %815 = vmatpush1.msra.mxu0 %v255
        %816 = vmatprep.subr.mxu0 0.0
        %817 = vmatpush1.msra.mxu0 %v256
        %818 = vmatprep.subr.mxu0 0.0
        %819 = vmatpush1.msra.mxu0 0.0
        %820 = vmatprep.subr.mxu0 0.0
        %821 = vmatpush1.msra.mxu0 0.0
        %822 = vmatprep.subr.mxu0 0.0
        %823 = vmatpush1.msra.mxu0 0.0
        %824 = vmatprep.subr.mxu0 0.0
        %825 = vmatpush1.msra.mxu0 0.0
        %826 = vmatprep.subr.mxu0 0.0
        %827 = vmatpush1.msra.mxu0 0.0
        %828 = vmatprep.subr.mxu0 0.0
        %829 = vmatpush1.msra.mxu0 0.0
        %830 = vmatprep.subr.mxu0 0.0
        %831 = vmatpush1.msra.mxu0 0.0
        %832 = vmatprep.subr.mxu0 0.0
        %833 = vmatpush1.msra.mxu0 0.0
        %834 = vmatprep.subr.mxu0 0.0
        %835 = vmatpush1.msra.mxu0 0.0
        %836 = vmatprep.subr.mxu0 0.0
        %837 = vmatpush1.msra.mxu0 0.0
        %838 = vmatprep.subr.mxu0 0.0
        %839 = vmatpush1.msra.mxu0 0.0
        %840 = vmatprep.subr.mxu0 0.0
        %841 = vmatpush1.msra.mxu0 0.0
        %842 = vmatprep.subr.mxu0 0.0
        %843 = vmatpush1.msra.mxu0 0.0
        %844 = vmatprep.subr.mxu0 0.0
        %845 = vmatpush1.msra.mxu0 0.0
        %846 = vmatprep.subr.mxu0 0.0
        %847 = vmatpush1.msra.mxu0 0.0
        %848 = vmatprep.subr.mxu0 0.0
        %849 = vmatpush1.msra.mxu0 0.0
        %850 = vmatprep.subr.mxu0 0.0
        %851 = vmatpush1.msra.mxu0 0.0
        %852 = vmatprep.subr.mxu0 0.0
        %853 = vmatpush1.msra.mxu0 0.0
        %854 = vmatprep.subr.mxu0 0.0
        %855 = vmatpush1.msra.mxu0 0.0
        %856 = vmatprep.subr.mxu0 0.0
        %857 = vmatpush1.msra.mxu0 0.0
        %858 = vmatprep.subr.mxu0 0.0
        %859 = vmatpush1.msra.mxu0 0.0
        %860 = vmatprep.subr.mxu0 0.0
        %861 = vmatpush1.msra.mxu0 0.0
        %862 = vmatprep.subr.mxu0 0.0
        %863 = vmatpush1.msra.mxu0 0.0
        %864 = vmatprep.subr.mxu0 0.0
        %865 = vmatpush1.msra.mxu0 0.0
        %866 = vmatprep.subr.mxu0 0.0
        %867 = vmatpush1.msra.mxu0 0.0
        %868 = vmatprep.subr.mxu0 0.0
        %869 = vmatpush1.msra.mxu0 0.0
        %870 = vmatprep.subr.mxu0 0.0
        %871 = vmatpush1.msra.mxu0 0.0
        %872 = vmatprep.subr.mxu0 0.0
        %873 = vmatpush1.msra.mxu0 0.0
        %874 = vmatprep.subr.mxu0 0.0
        %875 = vmatpush1.msra.mxu0 0.0
        %876 = vmatprep.subr.mxu0 0.0
        %877 = vmatpush1.msra.mxu0 0.0
        %878 = vmatprep.mubr.f32.mxu0 0.0
        %879 = vmatmul.mubr.f32.gmra.mrb[0].mxu0 %v812
        %v880 = vpop.f32.mrb[0].mxu0
        %v881 = vadd.f32 0.0, %v880
        %v882 = vpop.f32.mrb[0].mxu0
        %883 = vdwg.mxu0
        %885 = vrot.lane.b32.xlu0 %v881, 48
        %v886 = vpop.permute.xlu0 %885
        %vm888 = vcmask 454016
        %889 = vst.msk [vmem:[#allocation2] sm:$0xf] %vm888, %v886
        %v890 = vld [vmem:[%s251 + $0x4] sm:$0xf]
        %v891 = vmul.f32 %v890, %v261
        %v892 = vadd.f32 %v891, %v267
        %v893 = vmax.f32 %v892, 0.0
        %895 = vrot.lane.b32.xlu0 %v893, 112
        %v896 = vpop.permute.xlu0 %895
        %v898 = vadd.f32 %v893, %v896
        %900 = vrot.lane.b32.xlu0 %v898, 32
        %v901 = vpop.permute.xlu0 %900
        %v902 = vsel %vm276, %v901, 0
        %904 = vmatprep.subr.mxu0 0.0
        %905 = vmatpush1.msra.mxu0 %v255
        %906 = vmatprep.subr.mxu0 0.0
        %907 = vmatpush1.msra.mxu0 %v256
        %908 = vmatprep.subr.mxu0 0.0
        %909 = vmatpush1.msra.mxu0 0.0
        %910 = vmatprep.subr.mxu0 0.0
        %911 = vmatpush1.msra.mxu0 0.0
        %912 = vmatprep.subr.mxu0 0.0
        %913 = vmatpush1.msra.mxu0 0.0
        %914 = vmatprep.subr.mxu0 0.0
        %915 = vmatpush1.msra.mxu0 0.0
        %916 = vmatprep.subr.mxu0 0.0
        %917 = vmatpush1.msra.mxu0 0.0
        %918 = vmatprep.subr.mxu0 0.0
        %919 = vmatpush1.msra.mxu0 0.0
        %920 = vmatprep.subr.mxu0 0.0
        %921 = vmatpush1.msra.mxu0 0.0
        %922 = vmatprep.subr.mxu0 0.0
        %923 = vmatpush1.msra.mxu0 0.0
        %924 = vmatprep.subr.mxu0 0.0
        %925 = vmatpush1.msra.mxu0 0.0
        %926 = vmatprep.subr.mxu0 0.0
        %927 = vmatpush1.msra.mxu0 0.0
        %928 = vmatprep.subr.mxu0 0.0
        %929 = vmatpush1.msra.mxu0 0.0
        %930 = vmatprep.subr.mxu0 0.0
        %931 = vmatpush1.msra.mxu0 0.0
        %932 = vmatprep.subr.mxu0 0.0
        %933 = vmatpush1.msra.mxu0 0.0
        %934 = vmatprep.subr.mxu0 0.0
        %935 = vmatpush1.msra.mxu0 0.0
        %936 = vmatprep.subr.mxu0 0.0
        %937 = vmatpush1.msra.mxu0 0.0
        %938 = vmatprep.subr.mxu0 0.0
        %939 = vmatpush1.msra.mxu0 0.0
        %940 = vmatprep.subr.mxu0 0.0
        %941 = vmatpush1.msra.mxu0 0.0
        %942 = vmatprep.subr.mxu0 0.0
        %943 = vmatpush1.msra.mxu0 0.0
        %944 = vmatprep.subr.mxu0 0.0
        %945 = vmatpush1.msra.mxu0 0.0
        %946 = vmatprep.subr.mxu0 0.0
        %947 = vmatpush1.msra.mxu0 0.0
        %948 = vmatprep.subr.mxu0 0.0
        %949 = vmatpush1.msra.mxu0 0.0
        %950 = vmatprep.subr.mxu0 0.0
        %951 = vmatpush1.msra.mxu0 0.0
        %952 = vmatprep.subr.mxu0 0.0
        %953 = vmatpush1.msra.mxu0 0.0
        %954 = vmatprep.subr.mxu0 0.0
        %955 = vmatpush1.msra.mxu0 0.0
        %956 = vmatprep.subr.mxu0 0.0
        %957 = vmatpush1.msra.mxu0 0.0
        %958 = vmatprep.subr.mxu0 0.0
        %959 = vmatpush1.msra.mxu0 0.0
        %960 = vmatprep.subr.mxu0 0.0
        %961 = vmatpush1.msra.mxu0 0.0
        %962 = vmatprep.subr.mxu0 0.0
        %963 = vmatpush1.msra.mxu0 0.0
        %964 = vmatprep.subr.mxu0 0.0
        %965 = vmatpush1.msra.mxu0 0.0
        %966 = vmatprep.subr.mxu0 0.0
        %967 = vmatpush1.msra.mxu0 0.0
        %968 = vmatprep.mubr.f32.mxu0 0.0
        %969 = vmatmul.mubr.f32.gmra.mrb[0].mxu0 %v902
        %v970 = vpop.f32.mrb[0].mxu0
        %v971 = vadd.f32 0.0, %v970
        %v972 = vpop.f32.mrb[0].mxu0
        %973 = vdwg.mxu0
        %975 = vrot.lane.b32.xlu0 %v971, 56
        %v976 = vpop.permute.xlu0 %975
        %vm978 = vcmask 519616
        %979 = vst.msk [vmem:[#allocation2] sm:$0xf] %vm978, %v976
        %v980 = vld [vmem:[%s3] sm:$0xff]
        %v981 = vld [vmem:[#allocation2] sm:$0xf]
        %vm982 = vcmask 31744
        %v984 = vsel %vm982, %v980, 0
        %vm986 = vcmask 1043456
        %v988 = vsel %vm986, %v981, 0
        %990 = vmatprep.subr.mxu0 0.0
        %991 = vmatpush1.msra.mxu0 %v988
        %992 = vmatprep.subr.mxu0 0.0
        %993 = vmatpush1.msra.mxu0 0.0
        %994 = vmatprep.subr.mxu0 0.0
        %995 = vmatpush1.msra.mxu0 0.0
        %996 = vmatprep.subr.mxu0 0.0
        %997 = vmatpush1.msra.mxu0 0.0
        %998 = vmatprep.subr.mxu0 0.0
        %999 = vmatpush1.msra.mxu0 0.0
        %1000 = vmatprep.subr.mxu0 0.0
        %1001 = vmatpush1.msra.mxu0 0.0
        %1002 = vmatprep.subr.mxu0 0.0
        %1003 = vmatpush1.msra.mxu0 0.0
        %1004 = vmatprep.subr.mxu0 0.0
        %1005 = vmatpush1.msra.mxu0 0.0
        %1006 = vmatprep.subr.mxu0 0.0
        %1007 = vmatpush1.msra.mxu0 0.0
        %1008 = vmatprep.subr.mxu0 0.0
        %1009 = vmatpush1.msra.mxu0 0.0
        %1010 = vmatprep.subr.mxu0 0.0
        %1011 = vmatpush1.msra.mxu0 0.0
        %1012 = vmatprep.subr.mxu0 0.0
        %1013 = vmatpush1.msra.mxu0 0.0
        %1014 = vmatprep.subr.mxu0 0.0
        %1015 = vmatpush1.msra.mxu0 0.0
        %1016 = vmatprep.subr.mxu0 0.0
        %1017 = vmatpush1.msra.mxu0 0.0
        %1018 = vmatprep.subr.mxu0 0.0
        %1019 = vmatpush1.msra.mxu0 0.0
        %1020 = vmatprep.subr.mxu0 0.0
        %1021 = vmatpush1.msra.mxu0 0.0
        %1022 = vmatprep.subr.mxu0 0.0
        %1023 = vmatpush1.msra.mxu0 0.0
        %1024 = vmatprep.subr.mxu0 0.0
        %1025 = vmatpush1.msra.mxu0 0.0
        %1026 = vmatprep.subr.mxu0 0.0
        %1027 = vmatpush1.msra.mxu0 0.0
        %1028 = vmatprep.subr.mxu0 0.0
        %1029 = vmatpush1.msra.mxu0 0.0
        %1030 = vmatprep.subr.mxu0 0.0
        %1031 = vmatpush1.msra.mxu0 0.0
        %1032 = vmatprep.subr.mxu0 0.0
        %1033 = vmatpush1.msra.mxu0 0.0
        %1034 = vmatprep.subr.mxu0 0.0
        %1035 = vmatpush1.msra.mxu0 0.0
        %1036 = vmatprep.subr.mxu0 0.0
        %1037 = vmatpush1.msra.mxu0 0.0
        %1038 = vmatprep.subr.mxu0 0.0
        %1039 = vmatpush1.msra.mxu0 0.0
        %1040 = vmatprep.subr.mxu0 0.0
        %1041 = vmatpush1.msra.mxu0 0.0
        %1042 = vmatprep.subr.mxu0 0.0
        %1043 = vmatpush1.msra.mxu0 0.0
        %1044 = vmatprep.subr.mxu0 0.0
        %1045 = vmatpush1.msra.mxu0 0.0
        %1046 = vmatprep.subr.mxu0 0.0
        %1047 = vmatpush1.msra.mxu0 0.0
        %1048 = vmatprep.subr.mxu0 0.0
        %1049 = vmatpush1.msra.mxu0 0.0
        %1050 = vmatprep.subr.mxu0 0.0
        %1051 = vmatpush1.msra.mxu0 0.0
        %1052 = vmatprep.subr.mxu0 0.0
        %1053 = vmatpush1.msra.mxu0 0.0
        %1054 = vmatprep.mubr.f32.mxu0 0.0
        %1055 = vmatmul.mubr.f32.gmra.mrb[0].mxu0 %v984
        %v1056 = vpop.f32.mrb[0].mxu0
        %v1057 = vadd.f32 0.0, %v1056
        %v1058 = vpop.f32.mrb[0].mxu0
        %1059 = vdwg.mxu0
        %vm1060 = vcmask 523264
        %1061 = vst.msk [vmem:[%s242] sm:$0xff] %vm1060, %v1057
        %s1062 = sand.u32 %s153, 1
        %s1063 = scalar_lea.sflag [#allocation4], %s1062
        %s1064 = sand.u32 %s153, 1
        %s1065 = smul.addr %s1064, 8
        %s1066 = scalar_lea.vmem [#allocation3], %s1065
        // Predicated region
        $region41: #{tpu_custom_call.1} parent=39 // pred_check
          %p1067 = pneg %p163
        $region42: #{tpu_custom_call.1} parent=39 // pred_check_branch
          %1069 = sbr.rel (%p1067) target = $region44
        $region43: #{tpu_custom_call.1} parent=39 // pred_region
          %s1071 = ssub.s32 128, 128
          %1072 = vsyncadd %s1063, %s1071
          %s1073 = sadd.s32 %s24, %s23
          %s1074 = smul.addr %s1073, 128
          %s1075 = scalar_lea.hbm %s5, %s1074
          %s1077 = sshll.u32 %s1066, 4
          %s1078 = int_to_ptr.vmem [resolvable:$true] %s1077
          %1080 = dma.vmem_to_hbm [thread:$0]  %s1078, 128, %s1075, %s1063
        $region44: #{tpu_custom_call.1} parent=39 // pred_fallthru
          _
      $region40: #{tpu_custom_call.1} parent=5 // pred_fallthru
        _
      %p1081 = scmp.le.s32.totalorder 2, %s14
      // Predicated region
      $region45: #{tpu_custom_call.1} parent=5 // pred_check
        %p1082 = pneg %p1081
      $region46: #{tpu_custom_call.1} parent=5 // pred_check_branch
        %1084 = sbr.rel (%p1082) target = $region48
      $region47: #{tpu_custom_call.1} parent=5 // pred_region
        %s1085 = ssub.s32 %s14, 2
        // Predicated region
        $region49: #{tpu_custom_call.1} parent=47 // pred_check
          %p1086 = pneg %p169
        $region50: #{tpu_custom_call.1} parent=47 // pred_check_branch
          %1088 = sbr.rel (%p1086) target = $region52
        $region51: #{tpu_custom_call.1} parent=47 // pred_region
          %s1089 = sand.u32 %s154, 1
          %s1090 = scalar_lea.sflag [#allocation4], %s1089
          %s1091 = sand.u32 %s154, 1
          %s1092 = smul.addr %s1091, 8
          %s1093 = scalar_lea.vmem [#allocation3], %s1092
          %1094 = dma.done %s1090, 128
        $region52: #{tpu_custom_call.1} parent=47 // pred_fallthru
          _
      $region48: #{tpu_custom_call.1} parent=5 // pred_fallthru
        _
    $region6: #{tpu_custom_call.1} parent=1 // loop_footer
      %s18 = sadd.s32 1, %s14
    $region7: #{tpu_custom_call.1} parent=1 // loop_footer_branch
      %13 = sbr.rel target = $region3
    $region8: #{tpu_custom_call.1} parent=1 // loop_exit
      _
    %1095 = vsyncpa [#allocation4], 1
    %s1096 = scalar_lea.sflag [#allocation4], 1
    %1097 = vsyncpa %s1096, 1

</llo_original>
